<compile_context>
chip_gen: v5e
topology: v5e:2x2
jax: 0.10.0
libtpu: 0.0.40
codegen_flags: <defaults>
</compile_context>

<pallas_src>
import jax
import jax.numpy as jnp
from jax.experimental import pallas as pl
from jax.experimental.pallas import tpu as pltpu

EPS = 1e-6


def layernorm_kernel(x_ref, a_ref, b_ref, o_ref):
    # x_ref: (TR, F) tile of rows; a_ref/b_ref: (1, F) f32 scale/shift (resident)
    x = x_ref[...].astype(jnp.float32)
    f = x.shape[-1]
    mean = jnp.mean(x, axis=-1, keepdims=True)            # XLU cross-lane reduce
    diff = x - mean
    # torch.std default: unbiased estimator (divide by N-1)
    var = jnp.sum(diff * diff, axis=-1, keepdims=True) * (1.0 / (f - 1))
    std = jnp.sqrt(var)
    # Per-row reciprocal on the (TR,1) column -> EUP slot, avoids TRxF divides.
    # approx=False keeps the 1e-5 tolerance of the reference check.
    inv = pl.reciprocal(std + EPS, approx=False)
    y = diff * inv * a_ref[...] + b_ref[...]
    o_ref[...] = y.astype(o_ref.dtype)


def _choose_tile_rows(rows, feat, dtype,
                      *, vmem_budget_bytes=24 << 20, min_grid_steps=4):
    """Pick the largest sublane-aligned row tile that fits the VMEM budget,
    while keeping a few grid steps so both v7x TensorCores get work."""
    itemsize = jnp.dtype(dtype).itemsize
    sublane = {1: 32, 2: 16, 4: 8}.get(itemsize, 8)
    # Per resident row: 2x double-buffered input + 2x double-buffered output
    # in the I/O dtype, plus an f32 working copy and temporaries.
    per_row = feat * itemsize * 4 + feat * 4 * 2
    max_rows = max(sublane, (vmem_budget_bytes // per_row) // sublane * sublane)
    # Don't make the tile so big that the grid collapses below min_grid_steps
    # (keeps the parallel axis useful for v7x's 2 TensorCores).
    target = pl.cdiv(rows, min_grid_steps)
    target = max(sublane, pl.cdiv(target, sublane) * sublane)
    return min(max_rows, target)


def layer_norm(x, a2, b2, *, tile_rows=None):
    """LayerNorm over the last axis, matching the PyTorch custom module:
       a2 * (x - mean) / (std + eps) + b2  with unbiased std, eps added to std."""
    orig_shape = x.shape
    F = orig_shape[-1]
    assert F > 1, "features must be > 1 (unbiased std divides by F-1)"
    x2 = x.reshape(-1, F)
    R = x2.shape[0]

    if tile_rows is None:
        tile_rows = _choose_tile_rows(R, F, x.dtype)
    tile_rows = min(tile_rows, max(8, pl.cdiv(R, 1)))  # never bigger than needed

    # Pad rows so the grid covers R with equal tiles; padded rows are discarded.
    num_tiles = pl.cdiv(R, tile_rows)
    R_pad = num_tiles * tile_rows
    if R_pad != R:
        x2 = jnp.pad(x2, ((0, R_pad - R), (0, 0)))

    # Hoist the param cast to the wrapper; constant index_map keeps them
    # resident in VMEM across all grid steps.
    a2d = a2.reshape(1, F).astype(jnp.float32)
    b2d = b2.reshape(1, F).astype(jnp.float32)

    out = pl.pallas_call(
        layernorm_kernel,
        out_shape=jax.ShapeDtypeStruct((R_pad, F), x.dtype),
        grid_spec=pltpu.PrefetchScalarGridSpec(
            num_scalar_prefetch=0,
            grid=(num_tiles,),
            in_specs=[
                pl.BlockSpec((tile_rows, F), lambda i: (i, 0)),
                pl.BlockSpec((1, F), lambda i: (0, 0)),
                pl.BlockSpec((1, F), lambda i: (0, 0)),
            ],
            out_specs=pl.BlockSpec((tile_rows, F), lambda i: (i, 0)),
        ),
        compiler_params=pltpu.CompilerParams(
            dimension_semantics=("parallel",),
            vmem_limit_bytes=48 * 1024 * 1024,  # fits v7x's 64 MiB, free on v5e/v6e
        ),
    )(x2, a2d, b2d)

    if R_pad != R:
        out = out[:R]
    return out.reshape(orig_shape)


if __name__ == "__main__":
    key = jax.random.PRNGKey(0)
    # Shapes consistent with the module: d_model = 512 (lane-aligned), small batch/seq.
    batch, seq, features = 2, 8, 512
    kx, ka, kb = jax.random.split(key, 3)
    x = jax.random.normal(kx, (batch, seq, features), dtype=jnp.float32)

    def ref_ln(x, a2, b2):
        mean = jnp.mean(x, axis=-1, keepdims=True)
        std = jnp.sqrt(jnp.sum((x - mean) ** 2, axis=-1, keepdims=True)
                       / (x.shape[-1] - 1))
        return a2 * (x - mean) / (std + EPS) + b2

    # Case 1: default parameter init (ones / zeros), like nn.Parameter in the module.
    a2 = jnp.ones((features,), dtype=jnp.float32)
    b2 = jnp.zeros((features,), dtype=jnp.float32)
    y = jax.block_until_ready(layer_norm(x, a2, b2))
    assert jnp.allclose(y, ref_ln(x, a2, b2), atol=1e-5, rtol=1e-5), \
        "mismatch vs reference (unit scale/shift)"

    # Case 2: non-trivial scale/shift to exercise the affine path.
    a2r = 1.0 + 0.1 * jax.random.normal(ka, (features,), dtype=jnp.float32)
    b2r = 0.1 * jax.random.normal(kb, (features,), dtype=jnp.float32)
    y2 = jax.block_until_ready(layer_norm(x, a2r, b2r))
    assert jnp.allclose(y2, ref_ln(x, a2r, b2r), atol=1e-5, rtol=1e-5), \
        "mismatch vs reference (random scale/shift)"

    print("KERNEL_OK")
</pallas_src>

<mosaic_0001>
module attributes {stable_mosaic.version = 11 : i64} {
  func.func @layernorm_kernel(%arg0: i32, %arg1: memref<8x512xf32, #tpu.memory_space<vmem>>, %arg2: memref<1x512xf32, #tpu.memory_space<vmem>>, %arg3: memref<1x512xf32, #tpu.memory_space<vmem>>, %arg4: memref<8x512xf32, #tpu.memory_space<vmem>>) attributes {dimension_semantics = [#tpu.dimension_semantics<parallel>], iteration_bounds = array<i64: 2>, scalar_prefetch = 0 : i64, scratch_operands = 0 : i64, tpu.core_type = #tpu.core_type<tc>, window_params = [{transform_indices = @transform_0, window_bounds = array<i64: 8, 512>}, {pipeline_mode = #tpu.pipeline_mode<synchronous>, transform_indices = @transform_1, window_bounds = array<i64: 1, 512>}, {pipeline_mode = #tpu.pipeline_mode<synchronous>, transform_indices = @transform_2, window_bounds = array<i64: 1, 512>}, {transform_indices = @transform_3, window_bounds = array<i64: 8, 512>}]} {
    %c0 = arith.constant 0 : index
    %c0_0 = arith.constant 0 : index
    %0 = vector.load %arg1[%c0, %c0_0] : memref<8x512xf32, #tpu.memory_space<vmem>>, vector<8x512xf32>
    %cst = arith.constant dense<0.000000e+00> : vector<8xf32>
    %1 = vector.multi_reduction <add>, %0, %cst [1] : vector<8x512xf32> to vector<8xf32>
    %2 = vector.shape_cast %1 : vector<8xf32> to vector<8x1xf32>
    %cst_1 = arith.constant 5.120000e+02 : f32
    %3 = vector.broadcast %cst_1 : f32 to vector<8x1xf32>
    %4 = arith.divf %2, %3 : vector<8x1xf32>
    %5 = vector.broadcast %4 : vector<8x1xf32> to vector<8x512xf32>
    %6 = arith.subf %0, %5 : vector<8x512xf32>
    %7 = arith.mulf %6, %6 : vector<8x512xf32>
    %cst_2 = arith.constant dense<0.000000e+00> : vector<8xf32>
    %8 = vector.multi_reduction <add>, %7, %cst_2 [1] : vector<8x512xf32> to vector<8xf32>
    %9 = vector.shape_cast %8 : vector<8xf32> to vector<8x1xf32>
    %cst_3 = arith.constant 0.00195694715 : f32
    %10 = vector.broadcast %cst_3 : f32 to vector<8x1xf32>
    %11 = arith.mulf %9, %10 : vector<8x1xf32>
    %12 = math.sqrt %11 : vector<8x1xf32>
    %cst_4 = arith.constant 9.99999997E-7 : f32
    %13 = vector.broadcast %cst_4 : f32 to vector<8x1xf32>
    %14 = arith.addf %12, %13 : vector<8x1xf32>
    %15 = tpu.reciprocal %14 : vector<8x1xf32> -> vector<8x1xf32>
    %16 = vector.broadcast %15 : vector<8x1xf32> to vector<8x512xf32>
    %17 = arith.mulf %6, %16 : vector<8x512xf32>
    %c0_5 = arith.constant 0 : index
    %c0_6 = arith.constant 0 : index
    %18 = vector.load %arg2[%c0_5, %c0_6] : memref<1x512xf32, #tpu.memory_space<vmem>>, vector<1x512xf32>
    %19 = vector.broadcast %18 : vector<1x512xf32> to vector<8x512xf32>
    %20 = arith.mulf %17, %19 : vector<8x512xf32>
    %c0_7 = arith.constant 0 : index
    %c0_8 = arith.constant 0 : index
    %21 = vector.load %arg3[%c0_7, %c0_8] : memref<1x512xf32, #tpu.memory_space<vmem>>, vector<1x512xf32>
    %22 = vector.broadcast %21 : vector<1x512xf32> to vector<8x512xf32>
    %23 = arith.addf %20, %22 : vector<8x512xf32>
    %c0_9 = arith.constant 0 : index
    %c0_10 = arith.constant 0 : index
    %24 = vector.load %arg4[%c0_9, %c0_10] : memref<8x512xf32, #tpu.memory_space<vmem>>, vector<8x512xf32>
    tpu.vector_store %arg4[%c0_9, %c0_10], %23 {strides = array<i32>} : memref<8x512xf32, #tpu.memory_space<vmem>>, vector<8x512xf32>,
    return
  }
  func.func @transform_0(%arg0: i32) -> (i32, i32) {
    %c0_i32 = arith.constant 0 : i32
    %c0_i32_0 = arith.constant 0 : i32
    return %arg0, %c0_i32 : i32, i32
  }
  func.func @transform_1(%arg0: i32) -> (i32, i32) {
    %c0_i32 = arith.constant 0 : i32
    %c0_i32_0 = arith.constant 0 : i32
    %c0_i32_1 = arith.constant 0 : i32
    return %c0_i32, %c0_i32_0 : i32, i32
  }
  func.func @transform_2(%arg0: i32) -> (i32, i32) {
    %c0_i32 = arith.constant 0 : i32
    %c0_i32_0 = arith.constant 0 : i32
    %c0_i32_1 = arith.constant 0 : i32
    return %c0_i32, %c0_i32_0 : i32, i32
  }
  func.func @transform_3(%arg0: i32) -> (i32, i32) {
    %c0_i32 = arith.constant 0 : i32
    %c0_i32_0 = arith.constant 0 : i32
    return %arg0, %c0_i32 : i32, i32
  }
}

</mosaic_0001>

<llo_original>
// kernel: tpu_custom_call.1
$region0: #{tpu_custom_call.1}
  #allocation0 [shape = 'u32[]', space=smem, size = 0x4, offset = 0x4, fixed_abs, tag = 'smem constant byte address 0x4 - core index']
  #allocation1 [shape = 'u32[72,128]{1,0:T(1,128)}', space=vmem, size = 0x9000, scoped, tag = 'internal scratch']
  %s0 = inlined_call_operand.hbm [shape: f32[16,512], index: 0, kind: input, shape index: {}]
  %s1 = inlined_call_operand.hbm [shape: f32[1,512], index: 1, kind: input, shape index: {}]
  %s2 = inlined_call_operand.hbm [shape: f32[1,512], index: 2, kind: input, shape index: {}]
  %s3 = inlined_call_operand.hbm [shape: f32[16,512], index: 3, kind: output, shape index: {}]
  %s4 = sld [smem:[#allocation0]]
  $region57: #{tpu_custom_call.1} parent=0
    _
  %s6 = ssub.s32 1, %s4
  %s7 = scalar_select 0, %s6, %s4
  $region1: #{tpu_custom_call.1} parent=0
    #allocation2 [shape = 'u8[32768]{0}', space=vmem, size = 0x8000, scoped, tag = 'input window, operand 0']
    #allocation3 [shape = 's32[2]{0}', space=sflag, size = 0x8, scoped, tag = 'scoped memory for tpu_custom_call.1']
    #allocation4 [shape = 's32[2]{0}', space=sflag, size = 0x8, scoped, tag = 'scoped memory for tpu_custom_call.1']
    #allocation5 [shape = 'u8[2048]{0}', space=vmem, size = 0x800, scoped, tag = 'input window, operand 1, single buffered']
    #allocation6 [shape = 's32[1]{0}', space=sflag, size = 0x4, scoped, tag = 'scoped memory for tpu_custom_call.1']
    #allocation7 [shape = 'u8[2048]{0}', space=vmem, size = 0x800, scoped, tag = 'input window, operand 2, single buffered']
    #allocation8 [shape = 'u8[32768]{0}', space=vmem, size = 0x8000, scoped, tag = 'output window, operand 0']
    %8 = vsyncpa [#allocation3], 0
    %s9 = scalar_lea.sflag [#allocation3], 1
    %10 = vsyncpa %s9, 0
    %11 = vsyncpa [#allocation6], 0
    %12 = vsyncpa [#allocation4], 0
    %s13 = scalar_lea.sflag [#allocation4], 1
    %14 = vsyncpa %s13, 0
    loop: start=0, step=1, limit=4
    $region2: #{tpu_custom_call.1} parent=1 // loop_pre_header
      _
    $region3: #{tpu_custom_call.1} parent=1 // loop_header
      %s16 = sphi 0, %s20
      %p17 = scmp.ge.s32.totalorder %s16, 4
      %s26 = sphi 0, %s28
      %s29 = sphi 0, %s26
      %s30 = sphi 0, %s29
      %s46 = sphi 0, %s30
      %s50 = sphi 0, %s50
      %s52 = sphi 0, %s50
      %s53 = sphi 0, %s52
      %s67 = sphi 0, %s53
      %s71 = sphi 0, %s71
      %s73 = sphi 0, %s71
      %s74 = sphi 0, %s73
      %s88 = sphi 0, %s74
      %s94 = sphi 0, %s96
      %s97 = sphi 0, %s94
      %s98 = sphi 0, %s97
      %s114 = sphi 0, %s98
    $region4: #{tpu_custom_call.1} parent=1 // loop_header_branch
      %19 = sbr.rel (%p17) target = $region8
    $region5: #{tpu_custom_call.1} parent=1 // loop_body
      %s21 = ssub.s32 %s16, 1
      %s22 = ssub.s32 %s16, 2
      %s23 = sadd.s32 %s16, 1
      %s24 = ssub.s32 %s16, %s23
      %p25 = scmp.eq.s32.totalorder %s24, 0
      %s27 = sadd.s32 %s26, 1
      %s28 = scalar_select %p25, %s26, %s27
      %p31 = pneg %p25
      %p32 = scmp.eq.s32.totalorder %s16, 1
      %p33 = por %p31, %p32
      %p34 = scmp.ne.s32.totalorder %s26, %s29
      %p35 = scmp.eq.s32.totalorder %s16, 0
      %p36 = por %p34, %p35
      %p37 = scmp.ne.s32.totalorder %s26, %s29
      %p38 = scmp.eq.s32.totalorder %s21, 1
      %p39 = por %p37, %p38
      %p40 = scmp.ne.s32.totalorder %s29, %s30
      %p41 = scmp.eq.s32.totalorder %s21, 0
      %p42 = por %p40, %p41
      %p43 = scmp.ne.s32.totalorder %s29, %s30
      %p44 = scmp.eq.s32.totalorder %s22, 1
      %p45 = por %p43, %p44
      %p47 = scmp.ne.s32.totalorder %s30, %s46
      %p48 = scmp.eq.s32.totalorder %s22, 0
      %p49 = por %p47, %p48
      %s51 = sadd.s32 %s50, 1
      %p54 = scmp.eq.s32.totalorder %s16, 1
      %p55 = scmp.ne.s32.totalorder %s50, %s52
      %p56 = scmp.eq.s32.totalorder %s16, 0
      %p57 = por %p55, %p56
      %p58 = scmp.ne.s32.totalorder %s50, %s52
      %p59 = scmp.eq.s32.totalorder %s21, 1
      %p60 = por %p58, %p59
      %p61 = scmp.ne.s32.totalorder %s52, %s53
      %p62 = scmp.eq.s32.totalorder %s21, 0
      %p63 = por %p61, %p62
      %p64 = scmp.ne.s32.totalorder %s52, %s53
      %p65 = scmp.eq.s32.totalorder %s22, 1
      %p66 = por %p64, %p65
      %p68 = scmp.ne.s32.totalorder %s53, %s67
      %p69 = scmp.eq.s32.totalorder %s22, 0
      %p70 = por %p68, %p69
      %s72 = sadd.s32 %s71, 1
      %p75 = scmp.eq.s32.totalorder %s16, 1
      %p76 = scmp.ne.s32.totalorder %s71, %s73
      %p77 = scmp.eq.s32.totalorder %s16, 0
      %p78 = por %p76, %p77
      %p79 = scmp.ne.s32.totalorder %s71, %s73
      %p80 = scmp.eq.s32.totalorder %s21, 1
      %p81 = por %p79, %p80
      %p82 = scmp.ne.s32.totalorder %s73, %s74
      %p83 = scmp.eq.s32.totalorder %s21, 0
      %p84 = por %p82, %p83
      %p85 = scmp.ne.s32.totalorder %s73, %s74
      %p86 = scmp.eq.s32.totalorder %s22, 1
      %p87 = por %p85, %p86
      %p89 = scmp.ne.s32.totalorder %s74, %s88
      %p90 = scmp.eq.s32.totalorder %s22, 0
      %p91 = por %p89, %p90
      %s92 = ssub.s32 %s16, %s23
      %p93 = scmp.eq.s32.totalorder %s92, 0
      %s95 = sadd.s32 %s94, 1
      %s96 = scalar_select %p93, %s94, %s95
      %p99 = pneg %p93
      %p100 = scmp.eq.s32.totalorder %s16, 1
      %p101 = por %p99, %p100
      %p102 = scmp.ne.s32.totalorder %s94, %s97
      %p103 = scmp.eq.s32.totalorder %s16, 0
      %p104 = por %p102, %p103
      %p105 = scmp.ne.s32.totalorder %s94, %s97
      %p106 = scmp.eq.s32.totalorder %s21, 1
      %p107 = por %p105, %p106
      %p108 = scmp.ne.s32.totalorder %s97, %s98
      %p109 = scmp.eq.s32.totalorder %s21, 0
      %p110 = por %p108, %p109
      %p111 = scmp.ne.s32.totalorder %s97, %s98
      %p112 = scmp.eq.s32.totalorder %s22, 1
      %p113 = por %p111, %p112
      %p115 = scmp.ne.s32.totalorder %s98, %s114
      %p116 = scmp.eq.s32.totalorder %s22, 0
      %p117 = por %p115, %p116
      %p118 = scmp.le.s32.totalorder 1, %s16
      %p119 = scmp.lt.s32.totalorder %s16, 3
      %p120 = pnand %p118, %p119
      %p121 = pneg %p120
      // Predicated region
      $region9: #{tpu_custom_call.1} parent=5 // pred_check
        _
      $region10: #{tpu_custom_call.1} parent=5 // pred_check_branch
        %123 = sbr.rel (%p120) target = $region12
      $region11: #{tpu_custom_call.1} parent=5 // pred_region
        %s124 = ssub.s32 %s16, 1
        // Predicated region
        $region13: #{tpu_custom_call.1} parent=11 // pred_check
          %p125 = pneg %p63
        $region14: #{tpu_custom_call.1} parent=11 // pred_check_branch
          %127 = sbr.rel (%p125) target = $region16
        $region15: #{tpu_custom_call.1} parent=11 // pred_region
          %129 = vsyncadd [#allocation6], 0
          %s131 = sshll.u32 %s1, 4
          %s132 = int_to_ptr.hbm [resolvable:$true] %s131
          %s133 = sshll.u32 [#allocation5], 4
          %s134 = int_to_ptr.vmem [resolvable:$true] %s133
          %136 = dma.hbm_to_vmem [thread:$0]  %s132, 64, %s134, [#allocation6]
        $region16: #{tpu_custom_call.1} parent=11 // pred_fallthru
          _
        // Predicated region
        $region17: #{tpu_custom_call.1} parent=11 // pred_check
          %p137 = pneg %p84
        $region18: #{tpu_custom_call.1} parent=11 // pred_check_branch
          %139 = sbr.rel (%p137) target = $region20
        $region19: #{tpu_custom_call.1} parent=11 // pred_region
          %141 = vsyncadd [#allocation6], 0
          %s143 = sshll.u32 %s2, 4
          %s144 = int_to_ptr.hbm [resolvable:$true] %s143
          %s145 = sshll.u32 [#allocation7], 4
          %s146 = int_to_ptr.vmem [resolvable:$true] %s145
          %148 = dma.hbm_to_vmem [thread:$0]  %s144, 64, %s146, [#allocation6]
        $region20: #{tpu_custom_call.1} parent=11 // pred_fallthru
          _
      $region12: #{tpu_custom_call.1} parent=5 // pred_fallthru
        _
      %p149 = scmp.lt.s32.totalorder %s16, 2
      // Predicated region
      $region21: #{tpu_custom_call.1} parent=5 // pred_check
        %p150 = pneg %p149
      $region22: #{tpu_custom_call.1} parent=5 // pred_check_branch
        %152 = sbr.rel (%p150) target = $region24
      $region23: #{tpu_custom_call.1} parent=5 // pred_region
        // Predicated region
        $region25: #{tpu_custom_call.1} parent=23 // pred_check
          %p153 = pneg %p36
        $region26: #{tpu_custom_call.1} parent=23 // pred_check_branch
          %155 = sbr.rel (%p153) target = $region28
        $region27: #{tpu_custom_call.1} parent=23 // pred_region
          %s156 = sand.u32 %s26, 1
          %s157 = scalar_lea.sflag [#allocation3], %s156
          %s158 = sand.u32 %s26, 1
          %s159 = smul.addr %s158, 32
          %s160 = scalar_lea.vmem [#allocation2], %s159
          %162 = vsyncadd %s157, 0
          %s163 = smul.addr %s16, 4
          %s164 = smul.addr %s163, 8
          %s165 = scalar_lea.hbm %s0, %s164
          %s167 = sshll.u32 %s165, 4
          %s168 = int_to_ptr.hbm [resolvable:$true] %s167
          %s169 = sshll.u32 %s160, 4
          %s170 = int_to_ptr.vmem [resolvable:$true] %s169
          %172 = dma.hbm_to_vmem [thread:$0]  %s168, 512, %s170, %s157
        $region28: #{tpu_custom_call.1} parent=23 // pred_fallthru
          _
      $region24: #{tpu_custom_call.1} parent=5 // pred_fallthru
        _
      %p173 = scmp.le.s32.totalorder 1, %s16
      %p174 = scmp.lt.s32.totalorder %s16, 3
      %p175 = pnand %p173, %p174
      %p176 = pneg %p175
      // Predicated region
      $region29: #{tpu_custom_call.1} parent=5 // pred_check
        _
      $region30: #{tpu_custom_call.1} parent=5 // pred_check_branch
        %178 = sbr.rel (%p175) target = $region32
      $region31: #{tpu_custom_call.1} parent=5 // pred_region
        %s179 = ssub.s32 %s16, 1
        %s180 = sand.u32 %s29, 1
        %s181 = scalar_lea.sflag [#allocation3], %s180
        %s182 = sand.u32 %s29, 1
        %s183 = smul.addr %s182, 32
        %s184 = scalar_lea.vmem [#allocation2], %s183
        // Predicated region
        $region33: #{tpu_custom_call.1} parent=31 // pred_check
          %p185 = pneg %p42
        $region34: #{tpu_custom_call.1} parent=31 // pred_check_branch
          %187 = sbr.rel (%p185) target = $region36
        $region35: #{tpu_custom_call.1} parent=31 // pred_region
          %189 = dma.done %s181, 512
        $region36: #{tpu_custom_call.1} parent=31 // pred_fallthru
          _
        // Predicated region
        $region37: #{tpu_custom_call.1} parent=31 // pred_check
          %p190 = pneg %p63
        $region38: #{tpu_custom_call.1} parent=31 // pred_check_branch
          %192 = sbr.rel (%p190) target = $region40
        $region39: #{tpu_custom_call.1} parent=31 // pred_region
          %194 = dma.done [#allocation6], 64
        $region40: #{tpu_custom_call.1} parent=31 // pred_fallthru
          _
        // Predicated region
        $region41: #{tpu_custom_call.1} parent=31 // pred_check
          %p195 = pneg %p84
        $region42: #{tpu_custom_call.1} parent=31 // pred_check_branch
          %197 = sbr.rel (%p195) target = $region44
        $region43: #{tpu_custom_call.1} parent=31 // pred_region
          %199 = dma.done [#allocation6], 64
        $region44: #{tpu_custom_call.1} parent=31 // pred_fallthru
          _
        %s200 = sand.u32 %s29, 1
        %s201 = scalar_lea.sflag [#allocation3], %s200
        %s202 = sand.u32 %s29, 1
        %s203 = smul.addr %s202, 32
        %s204 = scalar_lea.vmem [#allocation2], %s203
        %p205 = pneg %p42
        %p206 = pneg %p39
        %p207 = pneg %p63
        %p208 = pneg %p60
        %p209 = pneg %p84
        %p210 = pneg %p81
        %p211 = pneg %p110
        %p212 = pneg %p107
        %s213 = sand.u32 %s97, 1
        %s214 = scalar_lea.sflag [#allocation4], %s213
        %s215 = sand.u32 %s97, 1
        %s216 = smul.addr %s215, 32
        %s217 = scalar_lea.vmem [#allocation8], %s216
        %v218 = vld [vmem:[%s184] sm:$0xff]
        %v219 = vld [vmem:[%s184 + $0x8] sm:$0xff]
        %v220 = vld [vmem:[%s184 + $0x10] sm:$0xff]
        %v221 = vld [vmem:[%s184 + $0x18] sm:$0xff]
        %v222 = vadd.f32 %v218, %v219
        %v223 = vadd.f32 %v222, %v220
        %v224 = vadd.f32 %v223, %v221
        %225 = vadd.xlane.f32.xlu0 %v224
        %v226 = vpop.xlane.xlu0 %225
        %v227 = vrcp.pop 512.0
        %v228 = vmul.f32 512.0, %v227
        %v229 = vsub.f32 1.0, %v228
        %v230 = vmul.f32 %v227, %v229
        %v231 = vadd.f32 %v227, %v230
        %vm232 = vweird.f32 %v227
        %v233 = vsel %vm232, %v227, %v231
        %v234 = vmul.f32 %v226, %v233
        %v235 = vsub.f32 %v218, %v234
        %v236 = vsub.f32 %v219, %v234
        %v237 = vsub.f32 %v220, %v234
        %v238 = vsub.f32 %v221, %v234
        %v239 = vmul.f32 %v235, %v235
        %v240 = vmul.f32 %v236, %v236
        %v241 = vmul.f32 %v237, %v237
        %v242 = vmul.f32 %v238, %v238
        %v243 = vadd.f32 %v239, %v240
        %v244 = vadd.f32 %v243, %v241
        %v245 = vadd.f32 %v244, %v242
        %246 = vadd.xlane.f32.xlu0 %v245
        %v247 = vpop.xlane.xlu0 %246
        %v248 = vmul.f32 %v247, 0.0019569471
        %v249 = vrsqrt.pop %v248
        %v250 = vmul.f32 %v249, %v248
        %v251 = vmul.f32 %v250, %v249
        %v252 = vmul.f32 0.5, %v251
        %v253 = vsub.f32 1.5, %v252
        %v254 = vmul.f32 %v249, %v253
        %v255 = vmul.f32 %v248, %v254
        %vm256 = vcmp.eq.f32.partialorder %v248, inf
        %v257 = vsel %vm256, %v248, %v255
        %vm258 = vcmp.eq.f32.partialorder %v248, 0.0
        %v259 = vand.u32 %v248, 2147483648
        %v260 = vsel %vm258, %v259, %v257
        %v261 = vadd.f32 %v260, 1e-06
        %v262 = vrcp.pop %v261
        %v263 = vmul.f32 %v261, %v262
        %v264 = vsub.f32 1.0, %v263
        %v265 = vmul.f32 %v262, %v264
        %v266 = vadd.f32 %v262, %v265
        %vm267 = vweird.f32 %v261
        %vm268 = vweird.f32 %v262
        %vm269 = vmor %vm267, %vm268
        %v270 = vsel %vm269, %v262, %v266
        %v271 = vand.u32 2147483647, %v261
        %vm272 = vcmp.eq.f32.partialorder %v271, 8.507059e+37
        %v273 = vand.u32 %v261, 2147483648
        %v274 = vor.u32 1.1754944e-38, %v273
        %v275 = vsel %vm272, %v274, %v270
        %v276 = vmul.f32 %v235, %v275
        %v277 = vmul.f32 %v236, %v275
        %v278 = vmul.f32 %v237, %v275
        %v279 = vmul.f32 %v238, %v275
        %v280 = vld [vmem:[#allocation5] sm:$0xf]
        %v282 = vperm.slane %v280, 0
        %v283 = vperm.slane %v280, 1
        %v284 = vperm.slane %v280, 2
        %v285 = vperm.slane %v280, 3
        %v290 = vmul.f32 %v276, %v282
        %v291 = vmul.f32 %v277, %v283
        %v292 = vmul.f32 %v278, %v284
        %v293 = vmul.f32 %v279, %v285
        %v294 = vld [vmem:[#allocation7] sm:$0xf]
        %v296 = vperm.slane %v294, 0
        %v297 = vperm.slane %v294, 1
        %v298 = vperm.slane %v294, 2
        %v299 = vperm.slane %v294, 3
        %v304 = vadd.f32 %v290, %v296
        %v305 = vadd.f32 %v291, %v297
        %v306 = vadd.f32 %v292, %v298
        %v307 = vadd.f32 %v293, %v299
        %308 = vst [vmem:[%s217] sm:$0xff] %v304
        %309 = vst [vmem:[%s217 + $0x8] sm:$0xff] %v305
        %310 = vst [vmem:[%s217 + $0x10] sm:$0xff] %v306
        %311 = vst [vmem:[%s217 + $0x18] sm:$0xff] %v307
        %s312 = sand.u32 %s97, 1
        %s313 = scalar_lea.sflag [#allocation4], %s312
        %s314 = sand.u32 %s97, 1
        %s315 = smul.addr %s314, 32
        %s316 = scalar_lea.vmem [#allocation8], %s315
        // Predicated region
        $region45: #{tpu_custom_call.1} parent=31 // pred_check
          %p317 = pneg %p107
        $region46: #{tpu_custom_call.1} parent=31 // pred_check_branch
          %319 = sbr.rel (%p317) target = $region48
        $region47: #{tpu_custom_call.1} parent=31 // pred_region
          %321 = vsyncadd %s313, 0
          %s322 = smul.addr %s21, 4
          %s323 = smul.addr %s322, 8
          %s324 = scalar_lea.hbm %s3, %s323
          %s326 = sshll.u32 %s316, 4
          %s327 = int_to_ptr.vmem [resolvable:$true] %s326
          %s328 = sshll.u32 %s324, 4
          %s329 = int_to_ptr.hbm [resolvable:$true] %s328
          %331 = dma.vmem_to_hbm [thread:$0]  %s327, 512, %s329, %s313
        $region48: #{tpu_custom_call.1} parent=31 // pred_fallthru
          _
      $region32: #{tpu_custom_call.1} parent=5 // pred_fallthru
        _
      %p332 = scmp.le.s32.totalorder 2, %s16
      // Predicated region
      $region49: #{tpu_custom_call.1} parent=5 // pred_check
        %p333 = pneg %p332
      $region50: #{tpu_custom_call.1} parent=5 // pred_check_branch
        %335 = sbr.rel (%p333) target = $region52
      $region51: #{tpu_custom_call.1} parent=5 // pred_region
        %s336 = ssub.s32 %s16, 2
        // Predicated region
        $region53: #{tpu_custom_call.1} parent=51 // pred_check
          %p337 = pneg %p113
        $region54: #{tpu_custom_call.1} parent=51 // pred_check_branch
          %339 = sbr.rel (%p337) target = $region56
        $region55: #{tpu_custom_call.1} parent=51 // pred_region
          %s340 = sand.u32 %s98, 1
          %s341 = scalar_lea.sflag [#allocation4], %s340
          %s342 = sand.u32 %s98, 1
          %s343 = smul.addr %s342, 32
          %s344 = scalar_lea.vmem [#allocation8], %s343
          %346 = dma.done %s341, 512
        $region56: #{tpu_custom_call.1} parent=51 // pred_fallthru
          _
      $region52: #{tpu_custom_call.1} parent=5 // pred_fallthru
        _
    $region6: #{tpu_custom_call.1} parent=1 // loop_footer
      %s20 = sadd.s32 1, %s16
    $region7: #{tpu_custom_call.1} parent=1 // loop_footer_branch
      %15 = sbr.rel target = $region3
    $region8: #{tpu_custom_call.1} parent=1 // loop_exit
      _
    %347 = vsyncpa [#allocation3], 1
    %s348 = scalar_lea.sflag [#allocation3], 1
    %349 = vsyncpa %s348, 1
    %350 = vsyncpa [#allocation6], 1
    %351 = vsyncpa [#allocation4], 1
    %s352 = scalar_lea.sflag [#allocation4], 1
    %353 = vsyncpa %s352, 1

</llo_original>
